<compile_context>
chip_gen: v7x
topology: tpu7x:2x2x1
jax: 0.10.0
libtpu: 0.0.40
codegen_flags: <defaults>
</compile_context>

<pallas_src>
import jax
import jax.numpy as jnp
from jax.experimental import pallas as pl
from jax.experimental.pallas import tpu as pltpu


def _round_up(x, m):
    return (x + m - 1) // m * m


def _vmem_capacity_bytes():
    """Per-TensorCore VMEM capacity; conservative fallback if unqueryable."""
    try:
        info = pltpu.get_tpu_info()
        cap = getattr(info, "vmem_capacity_bytes", None)
        if cap:
            return int(cap)
    except Exception:
        pass
    return 64 * 1024 * 1024  # v7x per-TC capacity (smallest of v5e/v6e/v7x)


# ---------------------------------------------------------------------------
# Kernels
# ---------------------------------------------------------------------------

def _mlp_disc_kernel_resident(x_ref, w1_ref, b1_ref, w2_ref, b2_ref, w3_ref,
                              b3_ref, out_ref):
    """Whole MLP per batch tile; w1/w2 fully resident in VMEM."""
    # Cast the f32 x tile to the MXU dtype in-register (no extra HBM pass).
    x = x_ref[...].astype(w1_ref.dtype)
    h1 = jnp.dot(x, w1_ref[...], preferred_element_type=jnp.float32)
    h1 = jnp.maximum(h1 + b1_ref[...], 0.0)                 # bias+ReLU in f32
    h2 = jnp.dot(h1.astype(w2_ref.dtype), w2_ref[...],
                 preferred_element_type=jnp.float32)
    h2 = jnp.maximum(h2 + b2_ref[...], 0.0)
    # Layer 3 (out_features == 1): VPU multiply + XLU lane reduction instead of
    # a 1-column MXU pass (those slots are otherwise idle).
    h3 = jnp.sum(h2 * w3_ref[...], axis=-1, keepdims=True) + b3_ref[0, 0]
    out_ref[...] = h3.astype(out_ref.dtype)


def _mlp_disc_kernel_streamed(x_ref, w1_ref, b1_ref, w2_ref, b2_ref, w3_ref,
                              b3_ref, out_ref, h1_ref, acc_ref):
    """Large-hidden path: w2 streamed in (hid_p, tn) column panels; layer 3 is
    fused into the panel loop so the full h2 is never materialized."""
    j = pl.program_id(1)

    @pl.when(j == 0)
    def _():
        x = x_ref[...].astype(w1_ref.dtype)
        h1 = jnp.dot(x, w1_ref[...], preferred_element_type=jnp.float32)
        h1 = jnp.maximum(h1 + b1_ref[...], 0.0)
        h1_ref[...] = h1.astype(h1_ref.dtype)     # keep activations in MXU dtype
        acc_ref[...] = jnp.zeros_like(acc_ref)

    h2 = jnp.dot(h1_ref[...], w2_ref[...], preferred_element_type=jnp.float32)
    h2 = jnp.maximum(h2 + b2_ref[...], 0.0)
    acc_ref[...] += jnp.sum(h2 * w3_ref[...], axis=-1, keepdims=True)

    @pl.when(j == pl.num_programs(1) - 1)
    def _():
        out_ref[...] = (acc_ref[...] + b3_ref[0, 0]).astype(out_ref.dtype)


# ---------------------------------------------------------------------------
# Parameter preparation (run ONCE, not per call)
# ---------------------------------------------------------------------------

def prepare_params(params, mxu_dtype=jnp.bfloat16):
    """Pad hidden dim to 128 lanes and cast weights to the MXU dtype, once.

    Zero padding is exact through ReLU (pad biases are 0, ReLU(0)=0, padded
    w2 rows / w3 entries are 0).  Use mxu_dtype=jnp.float32 for bit-parity
    with an exact f32 PyTorch forward (slower MXU path).
    """
    w1, b1 = params["w1"], params["b1"]
    w2, b2 = params["w2"], params["b2"]
    w3, b3 = params["w3"], params["b3"]
    input_dim, hidden_dim = w1.shape
    hid_p = _round_up(hidden_dim, 128)

    w1p = jnp.zeros((input_dim, hid_p), mxu_dtype).at[:, :hidden_dim].set(
        w1.astype(mxu_dtype))
    w2p = jnp.zeros((hid_p, hid_p), mxu_dtype).at[:hidden_dim, :hidden_dim].set(
        w2.astype(mxu_dtype))
    b1p = jnp.zeros((1, hid_p), jnp.float32).at[:, :hidden_dim].set(
        b1.reshape(1, hidden_dim).astype(jnp.float32))
    b2p = jnp.zeros((1, hid_p), jnp.float32).at[:, :hidden_dim].set(
        b2.reshape(1, hidden_dim).astype(jnp.float32))
    w3p = jnp.zeros((1, hid_p), jnp.float32).at[:, :hidden_dim].set(
        w3.reshape(1, hidden_dim).astype(jnp.float32))
    b3p = b3.reshape(1, 1).astype(jnp.float32)

    return {
        "input_dim": int(input_dim), "hidden_dim": int(hidden_dim),
        "hid_p": int(hid_p), "mxu_dtype": mxu_dtype,
        "w1": w1p, "b1": b1p, "w2": w2p, "b2": b2p, "w3": w3p, "b3": b3p,
    }


# ---------------------------------------------------------------------------
# Forward wrapper
# ---------------------------------------------------------------------------

def mlp_discriminator(x, prepared, *, block_m=None, block_n=None,
                      force_streaming=None):
    """Fused MLP discriminator forward.

    x: (batch, input_dim) float32; prepared: output of prepare_params().
    Returns (batch, 1) float32.
    """
    input_dim = prepared["input_dim"]
    hid_p = prepared["hid_p"]
    mxu_dtype = prepared["mxu_dtype"]
    itemsize = jnp.dtype(mxu_dtype).itemsize

    batch = x.shape[0]
    assert x.shape[1] == input_dim, (x.shape, input_dim)
    if x.dtype != jnp.float32:
        x = x.astype(jnp.float32)

    # ---- generation-aware VMEM budget -------------------------------------
    vmem_budget = int(0.8 * _vmem_capacity_bytes())   # headroom for Mosaic scratch

    # ---- batch tile size ----------------------------------------------------
    # bf16 packs two rows per sublane -> align rows to 16 (32 for 8-bit types).
    row_align = 8 * max(1, 4 // itemsize)
    if block_m is None:
        block_m = 1024 if hid_p <= 512 else 512
    block_m = max(row_align,
                  _round_up(min(block_m, _round_up(batch, row_align)), row_align))

    in_lane_p = _round_up(input_dim, 128)      # VMEM lane footprint of x tile
    w1_rows_p = _round_up(input_dim, row_align)

    # ---- path selection: resident w2 vs streamed w2 panels ------------------
    w2_bytes = hid_p * hid_p * itemsize
    if force_streaming is None:
        use_streaming = w2_bytes > 0.35 * vmem_budget
    else:
        use_streaming = bool(force_streaming)

    def _resident_est(bm, x_bufs):
        w = (w1_rows_p * hid_p + hid_p * hid_p) * itemsize        # single-buffered
        vec = 3 * 8 * hid_p * 4
        xb = x_bufs * bm * in_lane_p * 4
        ob = 2 * bm * 128 * 4
        act = 3 * bm * hid_p * 4
        return int(1.2 * (w + vec + xb + ob + act))

    def _streamed_est(bm, tn_):
        w1b = w1_rows_p * hid_p * itemsize
        panels = 2 * hid_p * tn_ * itemsize + 2 * 2 * 8 * tn_ * 4
        vec = 8 * hid_p * 4
        xb = 2 * bm * in_lane_p * 4
        ob = 2 * bm * 128 * 4
        scratch = bm * hid_p * itemsize + bm * 128 * 4
        act = 3 * bm * tn_ * 4
        return int(1.2 * (w1b + panels + vec + xb + ob + scratch + act))

    if use_streaming:
        if block_n is None:
            block_n = max(t for t in (512, 256, 128) if hid_p % t == 0)
        tn = int(block_n)
        assert hid_p % tn == 0
        est = _streamed_est(block_m, tn)
        while est > vmem_budget and block_m > row_align:
            block_m = max(row_align, _round_up(block_m // 2, row_align))
            est = _streamed_est(block_m, tn)
    else:
        tn = hid_p
        x_bufs = 3 if hid_p <= 256 else 2
        est = _resident_est(block_m, x_bufs)
        while est > vmem_budget and block_m > row_align:
            block_m = max(row_align, _round_up(block_m // 2, row_align))
            est = _resident_est(block_m, x_bufs)

    vmem_limit = int(min(max(est, 32 * 1024 * 1024), vmem_budget))

    grid_m = pl.cdiv(batch, block_m)
    rows = grid_m * block_m
    flops = 2 * rows * hid_p * (input_dim + hid_p + 1)
    bytes_accessed = (rows * input_dim * 4
                      + (w1_rows_p * hid_p + hid_p * hid_p) * itemsize
                      + 3 * hid_p * 4 + batch * 4)

    def _call(use_pipeline_modes):
        # Single-buffer constant-index-map (resident) operands; the default
        # double buffer would be dead VMEM weight.
        wmode = {"pipeline_mode": pl.Buffered(1)} if use_pipeline_modes else {}
        limit = vmem_limit if use_pipeline_modes else vmem_budget

        if not use_streaming:
            xmode = ({"pipeline_mode": pl.Buffered(3)}
                     if (use_pipeline_modes and hid_p <= 256) else {})
            grid = (grid_m,)
            in_specs = [
                pl.BlockSpec((block_m, input_dim), lambda i: (i, 0), **xmode),
                pl.BlockSpec((input_dim, hid_p), lambda i: (0, 0), **wmode),
                pl.BlockSpec((1, hid_p), lambda i: (0, 0), **wmode),
                pl.BlockSpec((hid_p, hid_p), lambda i: (0, 0), **wmode),
                pl.BlockSpec((1, hid_p), lambda i: (0, 0), **wmode),
                pl.BlockSpec((1, hid_p), lambda i: (0, 0), **wmode),
                pl.BlockSpec(memory_space=pltpu.MemorySpace.SMEM),
            ]
            out_specs = pl.BlockSpec((block_m, 1), lambda i: (i, 0))
            scratch_shapes = ()
            kernel = _mlp_disc_kernel_resident
            dims = ("parallel",)
        else:
            grid_n = hid_p // tn
            grid = (grid_m, grid_n)
            in_specs = [
                pl.BlockSpec((block_m, input_dim), lambda i, j: (i, 0)),
                pl.BlockSpec((input_dim, hid_p), lambda i, j: (0, 0), **wmode),
                pl.BlockSpec((1, hid_p), lambda i, j: (0, 0), **wmode),
                pl.BlockSpec((hid_p, tn), lambda i, j: (0, j)),     # streamed
                pl.BlockSpec((1, tn), lambda i, j: (0, j)),
                pl.BlockSpec((1, tn), lambda i, j: (0, j)),
                pl.BlockSpec(memory_space=pltpu.MemorySpace.SMEM),
            ]
            out_specs = pl.BlockSpec((block_m, 1), lambda i, j: (i, 0))
            scratch_shapes = (pltpu.VMEM((block_m, hid_p), mxu_dtype),
                              pltpu.VMEM((block_m, 1), jnp.float32))
            kernel = _mlp_disc_kernel_streamed
            dims = ("parallel", "arbitrary")

        return pl.pallas_call(
            kernel,
            out_shape=jax.ShapeDtypeStruct((batch, 1), jnp.float32),
            grid_spec=pltpu.PrefetchScalarGridSpec(
                num_scalar_prefetch=0,
                grid=grid,
                in_specs=in_specs,
                out_specs=out_specs,
                scratch_shapes=scratch_shapes,
            ),
            compiler_params=pltpu.CompilerParams(
                dimension_semantics=dims,
                vmem_limit_bytes=int(limit),
            ),
            cost_estimate=pl.CostEstimate(
                flops=int(flops), transcendentals=0,
                bytes_accessed=int(bytes_accessed)),
        )(x, prepared["w1"], prepared["b1"], prepared["w2"], prepared["b2"],
          prepared["w3"], prepared["b3"])

    try:
        return _call(use_pipeline_modes=True)
    except Exception:
        # Fallback for jax versions without BlockSpec(pipeline_mode=...) /
        # Buffered(1) support (only reachable when called eagerly).
        return _call(use_pipeline_modes=False)


# ---------------------------------------------------------------------------
# Reference + init
# ---------------------------------------------------------------------------

def init_params(key, input_dim, hidden_dim):
    """Deterministic parameter init (PyTorch-style uniform bounds)."""
    ks = jax.random.split(key, 6)

    def uniform(k, shape, fan_in):
        bound = 1.0 / jnp.sqrt(fan_in)
        return jax.random.uniform(k, shape, jnp.float32, -bound, bound)

    return {
        "w1": uniform(ks[0], (input_dim, hidden_dim), input_dim),
        "b1": uniform(ks[1], (1, hidden_dim), input_dim),
        "w2": uniform(ks[2], (hidden_dim, hidden_dim), hidden_dim),
        "b2": uniform(ks[3], (1, hidden_dim), hidden_dim),
        "w3": uniform(ks[4], (hidden_dim, 1), hidden_dim),
        "b3": uniform(ks[5], (1, 1), hidden_dim),
    }


def mlp_discriminator_ref(x, p, mxu_dtype=jnp.bfloat16):
    """Pure-JAX reference with the same bf16-in / f32-accumulate quantization."""
    xd = x.astype(mxu_dtype)
    h1 = jnp.dot(xd, p["w1"].astype(mxu_dtype),
                 preferred_element_type=jnp.float32) + p["b1"].reshape(1, -1)
    h1 = jnp.maximum(h1, 0.0)
    h2 = jnp.dot(h1.astype(mxu_dtype), p["w2"].astype(mxu_dtype),
                 preferred_element_type=jnp.float32) + p["b2"].reshape(1, -1)
    h2 = jnp.maximum(h2, 0.0)
    return (jnp.dot(h2, p["w3"], preferred_element_type=jnp.float32)
            + p["b3"].reshape(1, 1))


if __name__ == "__main__":
    key = jax.random.PRNGKey(0)
    k_x, k_p, k_x2, k_p2 = jax.random.split(key, 4)

    # --- Test 1: tiny shapes, resident-weight path (partial batch tile) -----
    batch, input_dim, hidden_dim = 8, 16, 32
    x = jax.random.normal(k_x, (batch, input_dim), dtype=jnp.float32)
    params = init_params(k_p, input_dim, hidden_dim)
    prepared = prepare_params(params)          # pad/cast ONCE, reused per call

    out = jax.block_until_ready(mlp_discriminator(x, prepared))
    ref = mlp_discriminator_ref(x, params)
    assert out.shape == (batch, 1), out.shape
    assert jnp.allclose(out, ref, atol=2e-3, rtol=2e-3), (out, ref)

    # --- Test 2: same weights through the streamed-w2 (large-hidden) path ---
    out_s = jax.block_until_ready(
        mlp_discriminator(x, prepared, force_streaming=True))
    assert jnp.allclose(out_s, ref, atol=2e-3, rtol=2e-3), (out_s, ref)

    # --- Test 3: multi-panel streaming + multi-tile batch grid ---------------
    batch2, input_dim2, hidden_dim2 = 48, 24, 256
    x2 = jax.random.normal(k_x2, (batch2, input_dim2), dtype=jnp.float32)
    params2 = init_params(k_p2, input_dim2, hidden_dim2)
    prepared2 = prepare_params(params2)
    out2 = jax.block_until_ready(
        mlp_discriminator(x2, prepared2, block_m=16, block_n=128,
                          force_streaming=True))
    ref2 = mlp_discriminator_ref(x2, params2)
    assert out2.shape == (batch2, 1), out2.shape
    assert jnp.allclose(out2, ref2, atol=2e-3, rtol=2e-3), (out2, ref2)

    print("KERNEL_OK")
</pallas_src>

<mosaic_0001>
module attributes {stable_mosaic.version = 11 : i64} {
  func.func @_mlp_disc_kernel_resident(%arg0: i32, %arg1: memref<16x16xf32, #tpu.memory_space<vmem>>, %arg2: memref<16x128xbf16, #tpu.memory_space<vmem>>, %arg3: memref<1x128xf32, #tpu.memory_space<vmem>>, %arg4: memref<128x128xbf16, #tpu.memory_space<vmem>>, %arg5: memref<1x128xf32, #tpu.memory_space<vmem>>, %arg6: memref<1x128xf32, #tpu.memory_space<vmem>>, %arg7: memref<1x1xf32, #tpu.memory_space<smem>>, %arg8: memref<16x1xf32, #tpu.memory_space<vmem>>) attributes {dimension_semantics = [#tpu.dimension_semantics<parallel>], iteration_bounds = array<i64: 1>, scalar_prefetch = 0 : i64, scratch_operands = 0 : i64, tpu.core_type = #tpu.core_type<tc>, window_params = [{transform_indices = @transform_0, window_bounds = array<i64: 16, 16>}, {pipeline_mode = #tpu.pipeline_mode<synchronous>, transform_indices = @transform_1, window_bounds = array<i64: 16, 128>}, {pipeline_mode = #tpu.pipeline_mode<synchronous>, transform_indices = @transform_2, window_bounds = array<i64: 1, 128>}, {pipeline_mode = #tpu.pipeline_mode<synchronous>, transform_indices = @transform_3, window_bounds = array<i64: 128, 128>}, {pipeline_mode = #tpu.pipeline_mode<synchronous>, transform_indices = @transform_4, window_bounds = array<i64: 1, 128>}, {pipeline_mode = #tpu.pipeline_mode<synchronous>, transform_indices = @transform_5, window_bounds = array<i64: 1, 128>}, {transform_indices = @transform_6, window_bounds = array<i64: 1, 1>}, {transform_indices = @transform_7, window_bounds = array<i64: 16, 1>}]} {
    %c0 = arith.constant 0 : index
    %c0_0 = arith.constant 0 : index
    %0 = vector.load %arg1[%c0, %c0_0] : memref<16x16xf32, #tpu.memory_space<vmem>>, vector<16x16xf32>
    %1 = arith.truncf %0 : vector<16x16xf32> to vector<16x16xbf16>
    %c0_1 = arith.constant 0 : index
    %c0_2 = arith.constant 0 : index
    %2 = vector.load %arg2[%c0_1, %c0_2] : memref<16x128xbf16, #tpu.memory_space<vmem>>, vector<16x128xbf16>
    %cst = arith.constant dense<0.000000e+00> : vector<16x128xf32>
    %3 = tpu.matmul %1, %2, %cst {dimension_numbers = #tpu.dot_dimension_numbers<[1], [0], [0], [1], [0, 0, 1, 1], [], []>} : vector<16x16xbf16>, vector<16x128xbf16>, vector<16x128xf32> -> vector<16x128xf32>
    %c0_3 = arith.constant 0 : index
    %c0_4 = arith.constant 0 : index
    %4 = vector.load %arg3[%c0_3, %c0_4] : memref<1x128xf32, #tpu.memory_space<vmem>>, vector<1x128xf32>
    %5 = vector.broadcast %4 : vector<1x128xf32> to vector<16x128xf32>
    %6 = arith.addf %3, %5 : vector<16x128xf32>
    %cst_5 = arith.constant 0.000000e+00 : f32
    %7 = vector.broadcast %cst_5 : f32 to vector<16x128xf32>
    %8 = arith.maximumf %6, %7 : vector<16x128xf32>
    %9 = arith.truncf %8 : vector<16x128xf32> to vector<16x128xbf16>
    %c0_6 = arith.constant 0 : index
    %c0_7 = arith.constant 0 : index
    %10 = vector.load %arg4[%c0_6, %c0_7] : memref<128x128xbf16, #tpu.memory_space<vmem>>, vector<128x128xbf16>
    %cst_8 = arith.constant dense<0.000000e+00> : vector<16x128xf32>
    %11 = tpu.matmul %9, %10, %cst_8 {dimension_numbers = #tpu.dot_dimension_numbers<[1], [0], [0], [1], [0, 0, 1, 1], [], []>} : vector<16x128xbf16>, vector<128x128xbf16>, vector<16x128xf32> -> vector<16x128xf32>
    %c0_9 = arith.constant 0 : index
    %c0_10 = arith.constant 0 : index
    %12 = vector.load %arg5[%c0_9, %c0_10] : memref<1x128xf32, #tpu.memory_space<vmem>>, vector<1x128xf32>
    %13 = vector.broadcast %12 : vector<1x128xf32> to vector<16x128xf32>
    %14 = arith.addf %11, %13 : vector<16x128xf32>
    %cst_11 = arith.constant 0.000000e+00 : f32
    %15 = vector.broadcast %cst_11 : f32 to vector<16x128xf32>
    %16 = arith.maximumf %14, %15 : vector<16x128xf32>
    %c0_12 = arith.constant 0 : index
    %c0_13 = arith.constant 0 : index
    %17 = vector.load %arg6[%c0_12, %c0_13] : memref<1x128xf32, #tpu.memory_space<vmem>>, vector<1x128xf32>
    %18 = vector.broadcast %17 : vector<1x128xf32> to vector<16x128xf32>
    %19 = arith.mulf %16, %18 : vector<16x128xf32>
    %cst_14 = arith.constant dense<0.000000e+00> : vector<16xf32>
    %20 = vector.multi_reduction <add>, %19, %cst_14 [1] : vector<16x128xf32> to vector<16xf32>
    %21 = vector.shape_cast %20 : vector<16xf32> to vector<16x1xf32>
    %c0_15 = arith.constant 0 : index
    %c0_16 = arith.constant 0 : index
    %22 = memref.load %arg7[%c0_15, %c0_16] : memref<1x1xf32, #tpu.memory_space<smem>>
    %23 = vector.broadcast %22 : f32 to vector<16x1xf32>
    %24 = arith.addf %21, %23 : vector<16x1xf32>
    %c0_17 = arith.constant 0 : index
    %c0_18 = arith.constant 0 : index
    %25 = vector.load %arg8[%c0_17, %c0_18] : memref<16x1xf32, #tpu.memory_space<vmem>>, vector<16x1xf32>
    tpu.vector_store %arg8[%c0_17, %c0_18], %24 {strides = array<i32>} : memref<16x1xf32, #tpu.memory_space<vmem>>, vector<16x1xf32>,
    return
  }
  func.func @transform_0(%arg0: i32) -> (i32, i32) {
    %c0_i32 = arith.constant 0 : i32
    %c0_i32_0 = arith.constant 0 : i32
    return %arg0, %c0_i32 : i32, i32
  }
  func.func @transform_1(%arg0: i32) -> (i32, i32) {
    %c0_i32 = arith.constant 0 : i32
    %c0_i32_0 = arith.constant 0 : i32
    %c0_i32_1 = arith.constant 0 : i32
    return %c0_i32, %c0_i32_0 : i32, i32
  }
  func.func @transform_2(%arg0: i32) -> (i32, i32) {
    %c0_i32 = arith.constant 0 : i32
    %c0_i32_0 = arith.constant 0 : i32
    %c0_i32_1 = arith.constant 0 : i32
    return %c0_i32, %c0_i32_0 : i32, i32
  }
  func.func @transform_3(%arg0: i32) -> (i32, i32) {
    %c0_i32 = arith.constant 0 : i32
    %c0_i32_0 = arith.constant 0 : i32
    %c0_i32_1 = arith.constant 0 : i32
    return %c0_i32, %c0_i32_0 : i32, i32
  }
  func.func @transform_4(%arg0: i32) -> (i32, i32) {
    %c0_i32 = arith.constant 0 : i32
    %c0_i32_0 = arith.constant 0 : i32
    %c0_i32_1 = arith.constant 0 : i32
    return %c0_i32, %c0_i32_0 : i32, i32
  }
  func.func @transform_5(%arg0: i32) -> (i32, i32) {
    %c0_i32 = arith.constant 0 : i32
    %c0_i32_0 = arith.constant 0 : i32
    %c0_i32_1 = arith.constant 0 : i32
    return %c0_i32, %c0_i32_0 : i32, i32
  }
  func.func @transform_6(%arg0: i32) -> (i32, i32) {
    %c0_i32 = arith.constant 0 : i32
    %c0_i32_0 = arith.constant 0 : i32
    %c0_i32_1 = arith.constant 0 : i32
    return %c0_i32, %c0_i32_0 : i32, i32
  }
  func.func @transform_7(%arg0: i32) -> (i32, i32) {
    %c0_i32 = arith.constant 0 : i32
    %c0_i32_0 = arith.constant 0 : i32
    return %arg0, %c0_i32 : i32, i32
  }
}

</mosaic_0001>

<llo_original>
// kernel: tpu_custom_call.1
$region0: #{tpu_custom_call.1}
  #allocation0 [shape = 'u32[]', space=smem, size = 0x4, offset = 0x4, fixed_abs, tag = 'smem constant byte address 0x4 - core index']
  #allocation1 [shape = 'u32[144,128]{1,0:T(1,128)}', space=vmem, size = 0x12000, scoped, tag = 'internal scratch']
  #allocation2 [shape = 'f32[1,1]{1,0:T(1,128)S(6)}', space=smem, size = 0x200, scoped, tag = 'scoped memory for tpu_custom_call.1']
  %s0 = inlined_call_operand.hbm [shape: f32[8,16], index: 0, kind: input, shape index: {}]
  %s1 = inlined_call_operand.hbm [shape: bf16[16,128], index: 1, kind: input, shape index: {}]
  %s2 = inlined_call_operand.vmem [shape: f32[1,128], index: 2, kind: input, shape index: {}]
  %s3 = inlined_call_operand.hbm [shape: bf16[128,128], index: 3, kind: input, shape index: {}]
  %s4 = inlined_call_operand.vmem [shape: f32[1,128], index: 4, kind: input, shape index: {}]
  %s5 = inlined_call_operand.vmem [shape: f32[1,128], index: 5, kind: input, shape index: {}]
  %s6 = inlined_call_operand.<no memory space> [shape: f32[1,1], index: 6, kind: input, shape index: {}]
  %s7 = inlined_call_operand.vmem [shape: f32[8,1], index: 7, kind: output, shape index: {}]
  %s8 = sld [smem:[#allocation0]]
  $region84: #{tpu_custom_call.1} parent=0
    _
  %s10 = ssub.s32 1, %s8
  %s11 = scalar_select 0, %s10, %s8
  %12 = sst [smem:[#allocation2]] %s6
  $region1: #{tpu_custom_call.1} parent=0
    #allocation3 [shape = 'u8[8192]{0}', space=vmem, size = 0x2000, scoped, tag = 'input window, operand 0, single buffered']
    #allocation4 [shape = 's32[1]{0}', space=sflag, size = 0x4, scoped, tag = 'scoped memory for tpu_custom_call.1']
    #allocation5 [shape = 'u8[4096]{0}', space=vmem, size = 0x1000, scoped, tag = 'input window, operand 1, single buffered']
    #allocation6 [shape = 's32[1]{0}', space=sflag, size = 0x4, scoped, tag = 'scoped memory for tpu_custom_call.1']
    #allocation7 [shape = 'u8[32768]{0}', space=vmem, size = 0x8000, scoped, tag = 'input window, operand 3, single buffered']
    #allocation8 [shape = 'u8[8192]{0}', space=vmem, size = 0x2000, scoped, tag = 'output window, operand 0, single buffered']
    %13 = vsyncpa [#allocation4], 0
    %14 = vsyncpa [#allocation6], 0
    // Predicated region
    $region2: #{tpu_custom_call.1} parent=1 // pred_check
      _
    $region3: #{tpu_custom_call.1} parent=1 // pred_check_branch
      %16 = sbr.rel (0) target = $region5
    $region4: #{tpu_custom_call.1} parent=1 // pred_region
      %s18 = ssub.s32 256, 128
      %19 = vsyncadd [#allocation4], %s18
      %s20 = sshll.u32 [#allocation3], 4
      %s21 = int_to_ptr.vmem [resolvable:$true] %s20
      %26 = dma.hbm_to_vmem [thread:$0]  %s0, 128, %s21, [#allocation4], 128, 128, 8
    $region5: #{tpu_custom_call.1} parent=1 // pred_fallthru
      _
    // Predicated region
    $region6: #{tpu_custom_call.1} parent=1 // pred_check
      _
    $region7: #{tpu_custom_call.1} parent=1 // pred_check_branch
      %28 = sbr.rel (0) target = $region9
    $region8: #{tpu_custom_call.1} parent=1 // pred_region
      %s30 = ssub.s32 128, 128
      %31 = vsyncadd [#allocation6], %s30
      %s32 = sshll.u32 [#allocation5], 4
      %s33 = int_to_ptr.vmem [resolvable:$true] %s32
      %38 = dma.hbm_to_vmem [thread:$0]  %s1, 128, %s33, [#allocation6], 64, 64, 4
    $region9: #{tpu_custom_call.1} parent=1 // pred_fallthru
      _
    // Predicated region
    $region10: #{tpu_custom_call.1} parent=1 // pred_check
      _
    $region11: #{tpu_custom_call.1} parent=1 // pred_check_branch
      %40 = sbr.rel (0) target = $region13
    $region12: #{tpu_custom_call.1} parent=1 // pred_region
      _
    $region13: #{tpu_custom_call.1} parent=1 // pred_fallthru
      _
    // Predicated region
    $region14: #{tpu_custom_call.1} parent=1 // pred_check
      _
    $region15: #{tpu_custom_call.1} parent=1 // pred_check_branch
      %42 = sbr.rel (0) target = $region17
    $region16: #{tpu_custom_call.1} parent=1 // pred_region
      %s44 = ssub.s32 1024, 1024
      %45 = vsyncadd [#allocation6], %s44
      %s46 = sshll.u32 [#allocation7], 4
      %s47 = int_to_ptr.vmem [resolvable:$true] %s46
      %52 = dma.hbm_to_vmem [thread:$0]  %s3, 1024, %s47, [#allocation6], 64, 64, 4
    $region17: #{tpu_custom_call.1} parent=1 // pred_fallthru
      _
    // Predicated region
    $region18: #{tpu_custom_call.1} parent=1 // pred_check
      _
    $region19: #{tpu_custom_call.1} parent=1 // pred_check_branch
      %54 = sbr.rel (0) target = $region21
    $region20: #{tpu_custom_call.1} parent=1 // pred_region
      _
    $region21: #{tpu_custom_call.1} parent=1 // pred_fallthru
      _
    // Predicated region
    $region22: #{tpu_custom_call.1} parent=1 // pred_check
      _
    $region23: #{tpu_custom_call.1} parent=1 // pred_check_branch
      %56 = sbr.rel (0) target = $region25
    $region24: #{tpu_custom_call.1} parent=1 // pred_region
      _
    $region25: #{tpu_custom_call.1} parent=1 // pred_fallthru
      _
    // Predicated region
    $region26: #{tpu_custom_call.1} parent=1 // pred_check
      _
    $region27: #{tpu_custom_call.1} parent=1 // pred_check_branch
      %58 = sbr.rel (0) target = $region29
    $region28: #{tpu_custom_call.1} parent=1 // pred_region
      _
    $region29: #{tpu_custom_call.1} parent=1 // pred_fallthru
      _
    // Predicated region
    $region30: #{tpu_custom_call.1} parent=1 // pred_check
      _
    $region31: #{tpu_custom_call.1} parent=1 // pred_check_branch
      %60 = sbr.rel (0) target = $region33
    $region32: #{tpu_custom_call.1} parent=1 // pred_region
      %61 = dma.done [#allocation4], 256
    $region33: #{tpu_custom_call.1} parent=1 // pred_fallthru
      _
    // Predicated region
    $region34: #{tpu_custom_call.1} parent=1 // pred_check
      _
    $region35: #{tpu_custom_call.1} parent=1 // pred_check_branch
      %63 = sbr.rel (0) target = $region37
    $region36: #{tpu_custom_call.1} parent=1 // pred_region
      %64 = dma.done [#allocation6], 128
    $region37: #{tpu_custom_call.1} parent=1 // pred_fallthru
      _
    // Predicated region
    $region38: #{tpu_custom_call.1} parent=1 // pred_check
      _
    $region39: #{tpu_custom_call.1} parent=1 // pred_check_branch
      %66 = sbr.rel (0) target = $region41
    $region40: #{tpu_custom_call.1} parent=1 // pred_region
      %67 = dma.done [#allocation6], 1024
    $region41: #{tpu_custom_call.1} parent=1 // pred_fallthru
      _
    %v69 = vld [vmem:[#allocation3] sm:$0xff]
    %v70 = vld [vmem:[#allocation3 + $0x8] sm:$0xff]
    %v71 = vpack.c.bf16 %v70, %v69
    %v72 = vld [vmem:[#allocation5] sm:$0xf]
    %v73 = vld [vmem:[#allocation5 + $0x4] sm:$0xf]
    %v74 = vld [vmem:[%s2] sm:$0x1]
    %v76 = vlaneseq
    %v77 = vshrl.u32 %v76, 7
    %v78 = vsub.s32 0, %v77
    %v79 = vrot.slane %v74, %v78
    %v83 = vunpack.c.l.b16 %v72
    %v84 = vunpack.c.l.b16 %v73
    %v85 = vpack.c.b16 %v84, %v83
    %vm87 = vcmask 130048
    %v89 = vsel %vm87, %v71, 0
    %91 = vmatprep.subr.bf16.mxu0 0
    %92 = vmatpush1.bf16.msra.mxu0 %v85
    %93 = vmatprep.subr.bf16.mxu0 0
    %94 = vmatpush1.bf16.msra.mxu0 0
    %95 = vmatprep.subr.bf16.mxu0 0
    %96 = vmatpush1.bf16.msra.mxu0 0
    %97 = vmatprep.subr.bf16.mxu0 0
    %98 = vmatpush1.bf16.msra.mxu0 0
    %99 = vmatprep.subr.bf16.mxu0 0
    %100 = vmatpush1.bf16.msra.mxu0 0
    %101 = vmatprep.subr.bf16.mxu0 0
    %102 = vmatpush1.bf16.msra.mxu0 0
    %103 = vmatprep.subr.bf16.mxu0 0
    %104 = vmatpush1.bf16.msra.mxu0 0
    %105 = vmatprep.subr.bf16.mxu0 0
    %106 = vmatpush1.bf16.msra.mxu0 0
    %107 = vmatprep.subr.bf16.mxu0 0
    %108 = vmatpush1.bf16.msra.mxu0 0
    %109 = vmatprep.subr.bf16.mxu0 0
    %110 = vmatpush1.bf16.msra.mxu0 0
    %111 = vmatprep.subr.bf16.mxu0 0
    %112 = vmatpush1.bf16.msra.mxu0 0
    %113 = vmatprep.subr.bf16.mxu0 0
    %114 = vmatpush1.bf16.msra.mxu0 0
    %115 = vmatprep.subr.bf16.mxu0 0
    %116 = vmatpush1.bf16.msra.mxu0 0
    %117 = vmatprep.subr.bf16.mxu0 0
    %118 = vmatpush1.bf16.msra.mxu0 0
    %119 = vmatprep.subr.bf16.mxu0 0
    %120 = vmatpush1.bf16.msra.mxu0 0
    %121 = vmatprep.subr.bf16.mxu0 0
    %122 = vmatpush1.bf16.msra.mxu0 0
    %123 = vmatprep.mubr.bf16.mxu0 0
    %124 = vmatmul.mubr.bf16.gmra.mrb[0].mxu0 %v89
    %v125 = vpop.f32.mrb[0].mxu0
    %v126 = vadd.f32 %v79, %v125
    %v127 = vpop.f32.mrb[0].mxu0
    %v128 = vpop.f32.mrb[0].mxu0
    %v129 = vadd.f32 %v79, %v128
    %v130 = vpop.f32.mrb[0].mxu0
    %131 = vdwg.mxu0
    %v132 = vmax.f32 %v126, 0.0
    %v133 = vmax.f32 %v129, 0.0
    %v134 = vpack.c.bf16 %v133, %v132
    %v135 = vld [vmem:[#allocation7] sm:$0xf]
    %v136 = vld [vmem:[#allocation7 + $0x4] sm:$0xf]
    %v137 = vld [vmem:[#allocation7 + $0x8] sm:$0xf]
    %v138 = vld [vmem:[#allocation7 + $0xc] sm:$0xf]
    %v139 = vld [vmem:[#allocation7 + $0x10] sm:$0xf]
    %v140 = vld [vmem:[#allocation7 + $0x14] sm:$0xf]
    %v141 = vld [vmem:[#allocation7 + $0x18] sm:$0xf]
    %v142 = vld [vmem:[#allocation7 + $0x1c] sm:$0xf]
    %v143 = vld [vmem:[#allocation7 + $0x20] sm:$0xf]
    %v144 = vld [vmem:[#allocation7 + $0x24] sm:$0xf]
    %v145 = vld [vmem:[#allocation7 + $0x28] sm:$0xf]
    %v146 = vld [vmem:[#allocation7 + $0x2c] sm:$0xf]
    %v147 = vld [vmem:[#allocation7 + $0x30] sm:$0xf]
    %v148 = vld [vmem:[#allocation7 + $0x34] sm:$0xf]
    %v149 = vld [vmem:[#allocation7 + $0x38] sm:$0xf]
    %v150 = vld [vmem:[#allocation7 + $0x3c] sm:$0xf]
    %v151 = vld [vmem:[%s4] sm:$0x1]
    %v153 = vlaneseq
    %v154 = vshrl.u32 %v153, 7
    %v155 = vsub.s32 0, %v154
    %v156 = vrot.slane %v151, %v155
    %v174 = vunpack.c.l.b16 %v135
    %v175 = vunpack.c.l.b16 %v136
    %v176 = vunpack.c.l.b16 %v137
    %v177 = vunpack.c.l.b16 %v138
    %v178 = vunpack.c.l.b16 %v139
    %v179 = vunpack.c.l.b16 %v140
    %v180 = vunpack.c.l.b16 %v141
    %v181 = vunpack.c.l.b16 %v142
    %v182 = vunpack.c.l.b16 %v143
    %v183 = vunpack.c.l.b16 %v144
    %v184 = vunpack.c.l.b16 %v145
    %v185 = vunpack.c.l.b16 %v146
    %v186 = vunpack.c.l.b16 %v147
    %v187 = vunpack.c.l.b16 %v148
    %v188 = vunpack.c.l.b16 %v149
    %v189 = vunpack.c.l.b16 %v150
    %v190 = vpack.c.b16 %v175, %v174
    %v191 = vpack.c.b16 %v177, %v176
    %v192 = vpack.c.b16 %v179, %v178
    %v193 = vpack.c.b16 %v181, %v180
    %v194 = vpack.c.b16 %v183, %v182
    %v195 = vpack.c.b16 %v185, %v184
    %v196 = vpack.c.b16 %v187, %v186
    %v197 = vpack.c.b16 %v189, %v188
    %206 = vmatprep.subr.bf16.mxu0 0
    %207 = vmatpush1.bf16.msra.mxu0 %v190
    %208 = vmatprep.subr.bf16.mxu0 0
    %209 = vmatpush1.bf16.msra.mxu0 %v191
    %210 = vmatprep.subr.bf16.mxu0 0
    %211 = vmatpush1.bf16.msra.mxu0 %v192
    %212 = vmatprep.subr.bf16.mxu0 0
    %213 = vmatpush1.bf16.msra.mxu0 %v193
    %214 = vmatprep.subr.bf16.mxu0 0
    %215 = vmatpush1.bf16.msra.mxu0 %v194
    %216 = vmatprep.subr.bf16.mxu0 0
    %217 = vmatpush1.bf16.msra.mxu0 %v195
    %218 = vmatprep.subr.bf16.mxu0 0
    %219 = vmatpush1.bf16.msra.mxu0 %v196
    %220 = vmatprep.subr.bf16.mxu0 0
    %221 = vmatpush1.bf16.msra.mxu0 %v197
    %222 = vmatprep.subr.bf16.mxu0 0
    %223 = vmatpush1.bf16.msra.mxu0 0
    %224 = vmatprep.subr.bf16.mxu0 0
    %225 = vmatpush1.bf16.msra.mxu0 0
    %226 = vmatprep.subr.bf16.mxu0 0
    %227 = vmatpush1.bf16.msra.mxu0 0
    %228 = vmatprep.subr.bf16.mxu0 0
    %229 = vmatpush1.bf16.msra.mxu0 0
    %230 = vmatprep.subr.bf16.mxu0 0
    %231 = vmatpush1.bf16.msra.mxu0 0
    %232 = vmatprep.subr.bf16.mxu0 0
    %233 = vmatpush1.bf16.msra.mxu0 0
    %234 = vmatprep.subr.bf16.mxu0 0
    %235 = vmatpush1.bf16.msra.mxu0 0
    %236 = vmatprep.subr.bf16.mxu0 0
    %237 = vmatpush1.bf16.msra.mxu0 0
    %238 = vmatprep.mubr.bf16.mxu0 0
    %239 = vmatmul.mubr.bf16.gmra.mrb[0].mxu0 %v134
    %v240 = vpop.f32.mrb[0].mxu0
    %v241 = vadd.f32 %v156, %v240
    %v242 = vpop.f32.mrb[0].mxu0
    %v243 = vpop.f32.mrb[0].mxu0
    %v244 = vadd.f32 %v156, %v243
    %v245 = vpop.f32.mrb[0].mxu0
    %246 = vdwg.mxu0
    %v247 = vmax.f32 %v241, 0.0
    %v248 = vmax.f32 %v244, 0.0
    %v249 = vld [vmem:[%s5] sm:$0x1]
    %v251 = vlaneseq
    %v252 = vshrl.u32 %v251, 7
    %v253 = vsub.s32 0, %v252
    %v254 = vrot.slane %v249, %v253
    %v256 = vmul.f32 %v247, %v254
    %v257 = vmul.f32 %v248, %v254
    %258 = vadd.xlane.f32.xlu0 %v256
    %v259 = vpop.xlane.xlu0 %258
    %260 = vadd.xlane.f32.xlu0 %v257
    %v261 = vpop.xlane.xlu0 %260
    %s262 = sld [smem:[#allocation2]]
    %v263 = vstv %s262
    %v264 = vadd.f32 %v259, %v263
    %v265 = vadd.f32 %v261, %v263
    %vm266 = vcmask 7168
    %267 = vst.msk [vmem:[#allocation8] sm:$0xff] %vm266, %v264
    %268 = vst.msk [vmem:[#allocation8 + $0x8] sm:$0xff] %vm266, %v265
    // Predicated region
    $region42: #{tpu_custom_call.1} parent=1 // pred_check
      _
    $region43: #{tpu_custom_call.1} parent=1 // pred_check_branch
      %270 = sbr.rel (0) target = $region45
    $region44: #{tpu_custom_call.1} parent=1 // pred_region
      // Predicated region
      $region46: #{tpu_custom_call.1} parent=44 // pred_check
        _
      $region47: #{tpu_custom_call.1} parent=44 // pred_check_branch
        %272 = sbr.rel (0) target = $region49
      $region48: #{tpu_custom_call.1} parent=44 // pred_region
        // Predicated region
        $region50: #{tpu_custom_call.1} parent=48 // pred_check
          _
        $region51: #{tpu_custom_call.1} parent=48 // pred_check_branch
          %274 = sbr.rel (0) target = $region53
        $region52: #{tpu_custom_call.1} parent=48 // pred_region
          // Predicated region
          $region65: #{tpu_custom_call.1} parent=52 // pred_check
            _
          $region66: #{tpu_custom_call.1} parent=52 // pred_check_branch
            %289 = sbr.rel (0) target = $region68
          $region67: #{tpu_custom_call.1} parent=52 // pred_region
            loop: start=0, step=1, limit=1
            $region69: #{tpu_custom_call.1} parent=67 // loop_pre_header
              _
            $region70: #{tpu_custom_call.1} parent=67 // loop_header
              %s291 = sphi 0, %s295
              %p292 = scmp.ge.s32.totalorder %s291, 1
              %s296 = sphi [#allocation8], [#allocation8]
              %s297 = sphi %s7, %s7
            $region71: #{tpu_custom_call.1} parent=67 // loop_header_branch
              %294 = sbr.rel (%p292) target = $region75
            $region72: #{tpu_custom_call.1} parent=67 // loop_body
              %v298 = vld [vmem:[%s296] sm:$0xff]
              %299 = vst [vmem:[%s297] sm:$0xff] %v298
            $region73: #{tpu_custom_call.1} parent=67 // loop_footer
              %s295 = sadd.s32 1, %s291
            $region74: #{tpu_custom_call.1} parent=67 // loop_footer_branch
              %290 = sbr.rel target = $region70
            $region75: #{tpu_custom_call.1} parent=67 // loop_exit
              _
          $region68: #{tpu_custom_call.1} parent=52 // pred_fallthru
            _
          // Predicated region
          $region76: #{tpu_custom_call.1} parent=52 // pred_check
            _
          $region77: #{tpu_custom_call.1} parent=52 // pred_check_branch
            %301 = sbr.rel target = $region79
          $region78: #{tpu_custom_call.1} parent=52 // pred_region
            _
          $region79: #{tpu_custom_call.1} parent=52 // pred_fallthru
            _
        $region53: #{tpu_custom_call.1} parent=48 // pred_fallthru
          _
        // Predicated region
        $region54: #{tpu_custom_call.1} parent=48 // pred_check
          _
        $region55: #{tpu_custom_call.1} parent=48 // pred_check_branch
          %276 = sbr.rel target = $region57
        $region56: #{tpu_custom_call.1} parent=48 // pred_region
          loop: start=0, step=1, limit=1
          $region58: #{tpu_custom_call.1} parent=56 // loop_pre_header
            _
          $region59: #{tpu_custom_call.1} parent=56 // loop_header
            %s279 = sphi 0, %s283
            %p280 = scmp.ge.s32.totalorder %s279, 1
            %s284 = sphi [#allocation8], [#allocation8]
            %s285 = sphi %s7, %s7
          $region60: #{tpu_custom_call.1} parent=56 // loop_header_branch
            %282 = sbr.rel (%p280) target = $region64
          $region61: #{tpu_custom_call.1} parent=56 // loop_body
            %v286 = vld [vmem:[%s284] sm:$0xff]
            %287 = vst [vmem:[%s285] sm:$0xff] %v286
          $region62: #{tpu_custom_call.1} parent=56 // loop_footer
            %s283 = sadd.s32 1, %s279
          $region63: #{tpu_custom_call.1} parent=56 // loop_footer_branch
            %278 = sbr.rel target = $region59
          $region64: #{tpu_custom_call.1} parent=56 // loop_exit
            _
        $region57: #{tpu_custom_call.1} parent=48 // pred_fallthru
          _
      $region49: #{tpu_custom_call.1} parent=44 // pred_fallthru
        _
      %302 = vnop
    $region45: #{tpu_custom_call.1} parent=1 // pred_fallthru
      _
    // Predicated region
    $region80: #{tpu_custom_call.1} parent=1 // pred_check
      _
    $region81: #{tpu_custom_call.1} parent=1 // pred_check_branch
      %304 = sbr.rel (0) target = $region83
    $region82: #{tpu_custom_call.1} parent=1 // pred_region
      _
    $region83: #{tpu_custom_call.1} parent=1 // pred_fallthru
      _
    %305 = vsyncpa [#allocation4], 1
    %306 = vsyncpa [#allocation6], 1

</llo_original>
